<compile_context>
chip_gen: v5e
topology: v5e:2x2
jax: 0.10.0
libtpu: 0.0.40
codegen_flags: <defaults>
</compile_context>

<pallas_src>
import functools
import math

import jax
import jax.numpy as jnp
from jax.experimental import pallas as pl
from jax.experimental.pallas import tpu as pltpu

_INV_SQRT2 = 1.0 / math.sqrt(2.0)


def _gelu_exact(x):
    # PyTorch nn.GELU() default: 0.5 * x * (1 + erf(x / sqrt(2)))
    return 0.5 * x * (1.0 + jax.lax.erf(x * _INV_SQRT2))


def _mlp_kernel(x_ref, w1_ref, b1_ref, w2_ref, b2_ref, o_ref, *,
                output_activation: bool):
    # fc1 (+bias) + exact GELU, accumulated in f32 on the MXU.
    h = jnp.dot(x_ref[...], w1_ref[...], preferred_element_type=jnp.float32)
    h = _gelu_exact(h + b1_ref[...])            # b1 is already f32 (1, inter)
    # fc2 (+bias); cast the intermediate back to the weight dtype so a bf16
    # weight path keeps the MXU in bf16.
    y = jnp.dot(h.astype(w2_ref.dtype), w2_ref[...],
                preferred_element_type=jnp.float32)
    y = y + b2_ref[...]                         # b2 is already f32 (1, out)
    if output_activation:
        y = _gelu_exact(y)
    o_ref[...] = y.astype(o_ref.dtype)


def _round_up(x: int, m: int) -> int:
    return ((x + m - 1) // m) * m


def llama4_vision_mlp(hidden_states, w1, b1, w2, b2, *,
                      output_activation: bool,
                      row_tile: int = 256,
                      compute_dtype=None):
    """hidden_states: [..., input_size]; returns [..., output_size].

    w1: [input_size, intermediate_size], w2: [intermediate_size, output_size]
    (i.e. stored as [in, out] so the kernel computes x @ W + b directly).
    """
    orig_shape = hidden_states.shape
    out_dtype = hidden_states.dtype
    in_size = orig_shape[-1]
    inter = w1.shape[1]
    out_size = w2.shape[1]

    x = hidden_states.reshape(-1, in_size)      # [tokens, input_size]
    tokens = x.shape[0]

    # Optional bf16 compute path (recommended in production: 2-4x MXU
    # throughput and half the resident-weight VMEM footprint).
    if compute_dtype is not None:
        x = x.astype(compute_dtype)
        w1 = w1.astype(compute_dtype)
        w2 = w2.astype(compute_dtype)

    # Row tile: 8-sublane aligned; default 256 matches the v6e/v7x 2x256x256
    # MXU and is a 128-multiple for v5e. Clamp for tiny inputs.
    tm = max(8, min(_round_up(row_tile, 8), _round_up(tokens, 8)))
    padded_tokens = _round_up(tokens, tm)
    if padded_tokens != tokens:
        x = jnp.pad(x, ((0, padded_tokens - tokens), (0, 0)))
    grid = (padded_tokens // tm,)

    # Biases as f32 (1, N): broadcast over rows, no per-grid-step casting.
    b1_2d = b1.reshape(1, inter).astype(jnp.float32)
    b2_2d = b2.reshape(1, out_size).astype(jnp.float32)

    kernel = functools.partial(_mlp_kernel, output_activation=output_activation)

    # Explicit VMEM budget: single-buffered weights + double-buffered x/out
    # tiles + the f32 [tm, inter] intermediate, with ~30% headroom.
    x_item = x.dtype.itemsize
    w_bytes = w1.size * w1.dtype.itemsize + w2.size * w2.dtype.itemsize
    b_bytes = (inter + out_size) * 4
    io_bytes = 2 * tm * in_size * x_item + 2 * tm * out_size * jnp.dtype(out_dtype).itemsize
    inter_bytes = 2 * tm * inter * 4
    vmem_limit = int(1.3 * (w_bytes + b_bytes + io_bytes + inter_bytes)) + (2 << 20)
    vmem_limit = max(min(vmem_limit, 112 * 1024 * 1024), 16 * 1024 * 1024)

    flops = 2 * padded_tokens * (in_size * inter + inter * out_size)
    transcendentals = padded_tokens * (inter + (out_size if output_activation else 0))
    bytes_accessed = (x.size * x_item + w_bytes + b_bytes
                      + padded_tokens * out_size * jnp.dtype(out_dtype).itemsize)

    out = pl.pallas_call(
        kernel,
        out_shape=jax.ShapeDtypeStruct((padded_tokens, out_size), out_dtype),
        grid_spec=pltpu.PrefetchScalarGridSpec(
            num_scalar_prefetch=0,
            grid=grid,
            in_specs=[
                # x tile: pipelined (double-buffered) over the row grid.
                pl.BlockSpec((tm, in_size), lambda i: (i, 0)),
                # Weights/biases: constant block index -> resident; single
                # buffer so we don't pay 2x VMEM for data that never changes.
                pl.BlockSpec((in_size, inter), lambda i: (0, 0),
                             pipeline_mode=pl.Buffered(1)),
                pl.BlockSpec((1, inter), lambda i: (0, 0),
                             pipeline_mode=pl.Buffered(1)),
                pl.BlockSpec((inter, out_size), lambda i: (0, 0),
                             pipeline_mode=pl.Buffered(1)),
                pl.BlockSpec((1, out_size), lambda i: (0, 0),
                             pipeline_mode=pl.Buffered(1)),
            ],
            out_specs=pl.BlockSpec((tm, out_size), lambda i: (i, 0)),
        ),
        compiler_params=pltpu.CompilerParams(
            dimension_semantics=("parallel",),
            vmem_limit_bytes=vmem_limit,
        ),
        cost_estimate=pl.CostEstimate(
            flops=flops,
            transcendentals=transcendentals,
            bytes_accessed=bytes_accessed,
        ),
    )(x, w1, b1_2d, w2, b2_2d)

    out = out[:tokens]
    return out.reshape(*orig_shape[:-1], out_size)


if __name__ == "__main__":
    # Small, module-consistent shapes.
    batch, seq = 2, 8
    input_size, intermediate_size, output_size = 32, 64, 32
    bias = True
    output_activation = True

    key = jax.random.PRNGKey(0)
    kx, k1, kb1, k2, kb2 = jax.random.split(key, 5)

    x = jax.random.normal(kx, (batch, seq, input_size), dtype=jnp.float32)
    # fc1: Linear(input_size -> intermediate_size); stored as [in, out].
    w1 = jax.random.normal(k1, (input_size, intermediate_size),
                           dtype=jnp.float32) * 0.05
    b1 = (jax.random.normal(kb1, (intermediate_size,), dtype=jnp.float32) * 0.05
          if bias else jnp.zeros((intermediate_size,), jnp.float32))
    # fc2: Linear(intermediate_size -> output_size); stored as [in, out].
    w2 = jax.random.normal(k2, (intermediate_size, output_size),
                           dtype=jnp.float32) * 0.05
    b2 = (jax.random.normal(kb2, (output_size,), dtype=jnp.float32) * 0.05
          if bias else jnp.zeros((output_size,), jnp.float32))

    # Pure-JAX reference of the fused module.
    def ref(xx):
        h = jax.nn.gelu(xx @ w1 + b1, approximate=False)
        o = h @ w2 + b2
        return jax.nn.gelu(o, approximate=False) if output_activation else o

    # 1) Standard path (tokens fit in one aligned tile).
    y = llama4_vision_mlp(x, w1, b1, w2, b2,
                          output_activation=output_activation)
    y = jax.block_until_ready(y)
    y_ref = ref(x)
    assert y.shape == (batch, seq, output_size)
    assert jnp.allclose(y, y_ref, atol=1e-5, rtol=1e-5), \
        f"max err {jnp.max(jnp.abs(y - y_ref))}"

    # 2) Ragged-token path: token count not divisible by the row tile
    #    (exercises wrapper padding + multi-step parallel grid).
    x_ragged = jax.random.normal(jax.random.PRNGKey(1), (2, 9, input_size),
                                 dtype=jnp.float32)
    y2 = llama4_vision_mlp(x_ragged, w1, b1, w2, b2,
                           output_activation=output_activation, row_tile=8)
    y2 = jax.block_until_ready(y2)
    y2_ref = ref(x_ragged)
    assert y2.shape == (2, 9, output_size)
    assert jnp.allclose(y2, y2_ref, atol=1e-5, rtol=1e-5), \
        f"max err {jnp.max(jnp.abs(y2 - y2_ref))}"

    print("KERNEL_OK")
</pallas_src>

<mosaic_0001>
module attributes {stable_mosaic.version = 11 : i64} {
  func.func @_mlp_kernel(%arg0: i32, %arg1: memref<16x32xf32, #tpu.memory_space<vmem>>, %arg2: memref<32x64xf32, #tpu.memory_space<vmem>>, %arg3: memref<1x64xf32, #tpu.memory_space<vmem>>, %arg4: memref<64x32xf32, #tpu.memory_space<vmem>>, %arg5: memref<1x32xf32, #tpu.memory_space<vmem>>, %arg6: memref<16x32xf32, #tpu.memory_space<vmem>>) attributes {dimension_semantics = [#tpu.dimension_semantics<parallel>], iteration_bounds = array<i64: 1>, scalar_prefetch = 0 : i64, scratch_operands = 0 : i64, tpu.core_type = #tpu.core_type<tc>, window_params = [{transform_indices = @transform_0, window_bounds = array<i64: 16, 32>}, {pipeline_mode = #tpu.pipeline_mode<synchronous>, transform_indices = @transform_1, window_bounds = array<i64: 32, 64>}, {pipeline_mode = #tpu.pipeline_mode<synchronous>, transform_indices = @transform_2, window_bounds = array<i64: 1, 64>}, {pipeline_mode = #tpu.pipeline_mode<synchronous>, transform_indices = @transform_3, window_bounds = array<i64: 64, 32>}, {pipeline_mode = #tpu.pipeline_mode<synchronous>, transform_indices = @transform_4, window_bounds = array<i64: 1, 32>}, {transform_indices = @transform_5, window_bounds = array<i64: 16, 32>}]} {
    %c0 = arith.constant 0 : index
    %c0_0 = arith.constant 0 : index
    %0 = vector.load %arg1[%c0, %c0_0] : memref<16x32xf32, #tpu.memory_space<vmem>>, vector<16x32xf32>
    %c0_1 = arith.constant 0 : index
    %c0_2 = arith.constant 0 : index
    %1 = vector.load %arg2[%c0_1, %c0_2] : memref<32x64xf32, #tpu.memory_space<vmem>>, vector<32x64xf32>
    %cst = arith.constant dense<0.000000e+00> : vector<16x64xf32>
    %2 = tpu.matmul %0, %1, %cst {dimension_numbers = #tpu.dot_dimension_numbers<[1], [0], [0], [1], [0, 0, 1, 1], [], []>} : vector<16x32xf32>, vector<32x64xf32>, vector<16x64xf32> -> vector<16x64xf32>
    %c0_3 = arith.constant 0 : index
    %c0_4 = arith.constant 0 : index
    %3 = vector.load %arg3[%c0_3, %c0_4] : memref<1x64xf32, #tpu.memory_space<vmem>>, vector<1x64xf32>
    %4 = vector.broadcast %3 : vector<1x64xf32> to vector<16x64xf32>
    %5 = arith.addf %2, %4 : vector<16x64xf32>
    %cst_5 = arith.constant 5.000000e-01 : f32
    %6 = vector.broadcast %cst_5 : f32 to vector<16x64xf32>
    %7 = arith.mulf %6, %5 : vector<16x64xf32>
    %cst_6 = arith.constant 0.707106769 : f32
    %8 = vector.broadcast %cst_6 : f32 to vector<16x64xf32>
    %9 = arith.mulf %5, %8 : vector<16x64xf32>
    %10 = math.erf %9 : vector<16x64xf32>
    %cst_7 = arith.constant 1.000000e+00 : f32
    %11 = vector.broadcast %cst_7 : f32 to vector<16x64xf32>
    %12 = arith.addf %11, %10 : vector<16x64xf32>
    %13 = arith.mulf %7, %12 : vector<16x64xf32>
    %c0_8 = arith.constant 0 : index
    %c0_9 = arith.constant 0 : index
    %14 = vector.load %arg4[%c0_8, %c0_9] : memref<64x32xf32, #tpu.memory_space<vmem>>, vector<64x32xf32>
    %cst_10 = arith.constant dense<0.000000e+00> : vector<16x32xf32>
    %15 = tpu.matmul %13, %14, %cst_10 {dimension_numbers = #tpu.dot_dimension_numbers<[1], [0], [0], [1], [0, 0, 1, 1], [], []>} : vector<16x64xf32>, vector<64x32xf32>, vector<16x32xf32> -> vector<16x32xf32>
    %c0_11 = arith.constant 0 : index
    %c0_12 = arith.constant 0 : index
    %16 = vector.load %arg5[%c0_11, %c0_12] : memref<1x32xf32, #tpu.memory_space<vmem>>, vector<1x32xf32>
    %17 = vector.broadcast %16 : vector<1x32xf32> to vector<16x32xf32>
    %18 = arith.addf %15, %17 : vector<16x32xf32>
    %cst_13 = arith.constant 5.000000e-01 : f32
    %19 = vector.broadcast %cst_13 : f32 to vector<16x32xf32>
    %20 = arith.mulf %19, %18 : vector<16x32xf32>
    %cst_14 = arith.constant 0.707106769 : f32
    %21 = vector.broadcast %cst_14 : f32 to vector<16x32xf32>
    %22 = arith.mulf %18, %21 : vector<16x32xf32>
    %23 = math.erf %22 : vector<16x32xf32>
    %cst_15 = arith.constant 1.000000e+00 : f32
    %24 = vector.broadcast %cst_15 : f32 to vector<16x32xf32>
    %25 = arith.addf %24, %23 : vector<16x32xf32>
    %26 = arith.mulf %20, %25 : vector<16x32xf32>
    %c0_16 = arith.constant 0 : index
    %c0_17 = arith.constant 0 : index
    %27 = vector.load %arg6[%c0_16, %c0_17] : memref<16x32xf32, #tpu.memory_space<vmem>>, vector<16x32xf32>
    tpu.vector_store %arg6[%c0_16, %c0_17], %26 {strides = array<i32>} : memref<16x32xf32, #tpu.memory_space<vmem>>, vector<16x32xf32>,
    return
  }
  func.func @transform_0(%arg0: i32) -> (i32, i32) {
    %c0_i32 = arith.constant 0 : i32
    %c0_i32_0 = arith.constant 0 : i32
    return %arg0, %c0_i32 : i32, i32
  }
  func.func @transform_1(%arg0: i32) -> (i32, i32) {
    %c0_i32 = arith.constant 0 : i32
    %c0_i32_0 = arith.constant 0 : i32
    %c0_i32_1 = arith.constant 0 : i32
    return %c0_i32, %c0_i32_0 : i32, i32
  }
  func.func @transform_2(%arg0: i32) -> (i32, i32) {
    %c0_i32 = arith.constant 0 : i32
    %c0_i32_0 = arith.constant 0 : i32
    %c0_i32_1 = arith.constant 0 : i32
    return %c0_i32, %c0_i32_0 : i32, i32
  }
  func.func @transform_3(%arg0: i32) -> (i32, i32) {
    %c0_i32 = arith.constant 0 : i32
    %c0_i32_0 = arith.constant 0 : i32
    %c0_i32_1 = arith.constant 0 : i32
    return %c0_i32, %c0_i32_0 : i32, i32
  }
  func.func @transform_4(%arg0: i32) -> (i32, i32) {
    %c0_i32 = arith.constant 0 : i32
    %c0_i32_0 = arith.constant 0 : i32
    %c0_i32_1 = arith.constant 0 : i32
    return %c0_i32, %c0_i32_0 : i32, i32
  }
  func.func @transform_5(%arg0: i32) -> (i32, i32) {
    %c0_i32 = arith.constant 0 : i32
    %c0_i32_0 = arith.constant 0 : i32
    return %arg0, %c0_i32 : i32, i32
  }
}

</mosaic_0001>

<llo_original>
// kernel: tpu_custom_call.1
$region0: #{tpu_custom_call.1}
  #allocation0 [shape = 'u32[]', space=smem, size = 0x4, offset = 0x4, fixed_abs, tag = 'smem constant byte address 0x4 - core index']
  #allocation1 [shape = 'u32[72,128]{1,0:T(1,128)}', space=vmem, size = 0x9000, scoped, tag = 'internal scratch']
  %s0 = inlined_call_operand.vmem [shape: f32[16,32], index: 0, kind: input, shape index: {}]
  %s1 = inlined_call_operand.vmem [shape: f32[32,64], index: 1, kind: input, shape index: {}]
  %s2 = inlined_call_operand.vmem [shape: f32[1,64], index: 2, kind: input, shape index: {}]
  %s3 = inlined_call_operand.vmem [shape: f32[64,32], index: 3, kind: input, shape index: {}]
  %s4 = inlined_call_operand.vmem [shape: f32[1,32], index: 4, kind: input, shape index: {}]
  %s5 = inlined_call_operand.hbm [shape: f32[16,32], index: 5, kind: output, shape index: {}]
  %s6 = sld [smem:[#allocation0]]
  $region30: #{tpu_custom_call.1} parent=0
    _
  %s8 = ssub.s32 1, %s6
  %s9 = scalar_select 0, %s8, %s6
  $region1: #{tpu_custom_call.1} parent=0
    #allocation2 [shape = 'u8[8192]{0}', space=vmem, size = 0x2000, scoped, tag = 'output window, operand 0, single buffered']
    #allocation3 [shape = 's32[1]{0}', space=sflag, size = 0x4, scoped, tag = 'scoped memory for tpu_custom_call.1']
    %10 = vsyncpa [#allocation3], 0
    // Predicated region
    $region2: #{tpu_custom_call.1} parent=1 // pred_check
      _
    $region3: #{tpu_custom_call.1} parent=1 // pred_check_branch
      %12 = sbr.rel (0) target = $region5
    $region4: #{tpu_custom_call.1} parent=1 // pred_region
      _
    $region5: #{tpu_custom_call.1} parent=1 // pred_fallthru
      _
    // Predicated region
    $region6: #{tpu_custom_call.1} parent=1 // pred_check
      _
    $region7: #{tpu_custom_call.1} parent=1 // pred_check_branch
      %14 = sbr.rel (0) target = $region9
    $region8: #{tpu_custom_call.1} parent=1 // pred_region
      _
    $region9: #{tpu_custom_call.1} parent=1 // pred_fallthru
      _
    // Predicated region
    $region10: #{tpu_custom_call.1} parent=1 // pred_check
      _
    $region11: #{tpu_custom_call.1} parent=1 // pred_check_branch
      %16 = sbr.rel (0) target = $region13
    $region12: #{tpu_custom_call.1} parent=1 // pred_region
      _
    $region13: #{tpu_custom_call.1} parent=1 // pred_fallthru
      _
    // Predicated region
    $region14: #{tpu_custom_call.1} parent=1 // pred_check
      _
    $region15: #{tpu_custom_call.1} parent=1 // pred_check_branch
      %18 = sbr.rel (0) target = $region17
    $region16: #{tpu_custom_call.1} parent=1 // pred_region
      _
    $region17: #{tpu_custom_call.1} parent=1 // pred_fallthru
      _
    // Predicated region
    $region18: #{tpu_custom_call.1} parent=1 // pred_check
      _
    $region19: #{tpu_custom_call.1} parent=1 // pred_check_branch
      %20 = sbr.rel (0) target = $region21
    $region20: #{tpu_custom_call.1} parent=1 // pred_region
      _
    $region21: #{tpu_custom_call.1} parent=1 // pred_fallthru
      _
    %v21 = vld [vmem:[%s0] sm:$0xff]
    %v22 = vld [vmem:[%s0 + $0x8] sm:$0xff]
    %v23 = vld [vmem:[%s1] sm:$0xff]
    %v24 = vld [vmem:[%s1 + $0x8] sm:$0xff]
    %v25 = vld [vmem:[%s1 + $0x10] sm:$0xff]
    %v26 = vld [vmem:[%s1 + $0x18] sm:$0xff]
    %v27 = vld [vmem:[%s2] sm:$0x1]
    %v29 = vperm.slane %v27, 0
    %vm31 = vcmask 261120
    %v33 = vsel %vm31, %v21, 0
    %v36 = vsel %vm31, %v22, 0
    %38 = vmatpush.msra.mxu0 0.0
    %39 = vmatpush.msra.mxu0 0.0
    %40 = vmatpush.msra.mxu0 0.0
    %41 = vmatpush.msra.mxu0 0.0
    %42 = vmatpush.msra.mxu0 0.0
    %43 = vmatpush.msra.mxu0 0.0
    %44 = vmatpush.msra.mxu0 0.0
    %45 = vmatpush.msra.mxu0 0.0
    %46 = vmatpush.msra.mxu0 0.0
    %47 = vmatpush.msra.mxu0 0.0
    %48 = vmatpush.msra.mxu0 0.0
    %49 = vmatpush.msra.mxu0 0.0
    %50 = vmatpush.msra.mxu0 %v26
    %51 = vmatpush.msra.mxu0 %v25
    %52 = vmatpush.msra.mxu0 %v24
    %53 = vmatpush.msra.mxu0 %v23
    %54 = vmatmul.f32.gmra.mxu0 %v33
    %v55 = vpop.f32.mrf.mxu0
    %v56 = vadd.f32 %v29, %v55
    %57 = vmatmul.f32.gmra.mxu0 %v36
    %v58 = vpop.f32.mrf.mxu0
    %v59 = vadd.f32 %v29, %v58
    %60 = vdwg.mxu0
    %v61 = vmul.f32 %v56, 0.5
    %v62 = vmul.f32 %v59, 0.5
    %v63 = vmul.f32 %v56, 0.70710677
    %v64 = vmul.f32 %v59, 0.70710677
    %v65 = vmul.f32 %v63, %v63
    %v66 = vmin.f32 16.0, %v65
    %v67 = vmul.f32 %v66, 2.1237322e-06
    %v68 = vadd.f32 %v67, 0.00028619796
    %v69 = vmul.f32 %v66, %v68
    %v70 = vadd.f32 %v69, 0.0036580483
    %v71 = vmul.f32 %v66, %v70
    %v72 = vadd.f32 %v71, 0.05243302
    %v73 = vmul.f32 %v66, %v72
    %v74 = vadd.f32 %v73, 0.18741608
    %v75 = vmul.f32 %v66, %v74
    %v76 = vadd.f32 %v75, 1.1283791
    %v77 = vmul.f32 %v63, %v76
    %v78 = vmul.f32 %v66, 3.8918573e-05
    %v79 = vadd.f32 %v78, 0.001143296
    %v80 = vmul.f32 %v66, %v79
    %v81 = vadd.f32 %v80, 0.014752088
    %v82 = vmul.f32 %v66, %v81
    %v83 = vadd.f32 %v82, 0.112945676
    %v84 = vmul.f32 %v66, %v83
    %v85 = vadd.f32 %v84, 0.4994258
    %v86 = vmul.f32 %v66, %v85
    %v87 = vadd.f32 %v86, 1.0
    %v88 = vrcp.pop %v87
    %v89 = vmul.f32 %v87, %v88
    %v90 = vsub.f32 1.0, %v89
    %v91 = vmul.f32 %v88, %v90
    %v92 = vadd.f32 %v88, %v91
    %vm93 = vweird.f32 %v87
    %vm94 = vweird.f32 %v88
    %vm95 = vmor %vm93, %vm94
    %v96 = vsel %vm95, %v88, %v92
    %v97 = vand.u32 2147483647, %v87
    %vm98 = vcmp.eq.f32.partialorder %v97, 8.507059e+37
    %v99 = vand.u32 %v87, 2147483648
    %v100 = vor.u32 1.1754944e-38, %v99
    %v101 = vsel %vm98, %v100, %v96
    %v102 = vmul.f32 %v77, %v101
    %v103 = vmin.f32 %v102, 1.0
    %v104 = vmax.f32 %v103, -1.0
    %v105 = vmul.f32 %v64, %v64
    %v106 = vmin.f32 16.0, %v105
    %v107 = vmul.f32 %v106, 2.1237322e-06
    %v108 = vadd.f32 %v107, 0.00028619796
    %v109 = vmul.f32 %v106, %v108
    %v110 = vadd.f32 %v109, 0.0036580483
    %v111 = vmul.f32 %v106, %v110
    %v112 = vadd.f32 %v111, 0.05243302
    %v113 = vmul.f32 %v106, %v112
    %v114 = vadd.f32 %v113, 0.18741608
    %v115 = vmul.f32 %v106, %v114
    %v116 = vadd.f32 %v115, 1.1283791
    %v117 = vmul.f32 %v64, %v116
    %v118 = vmul.f32 %v106, 3.8918573e-05
    %v119 = vadd.f32 %v118, 0.001143296
    %v120 = vmul.f32 %v106, %v119
    %v121 = vadd.f32 %v120, 0.014752088
    %v122 = vmul.f32 %v106, %v121
    %v123 = vadd.f32 %v122, 0.112945676
    %v124 = vmul.f32 %v106, %v123
    %v125 = vadd.f32 %v124, 0.4994258
    %v126 = vmul.f32 %v106, %v125
    %v127 = vadd.f32 %v126, 1.0
    %v128 = vrcp.pop %v127
    %v129 = vmul.f32 %v127, %v128
    %v130 = vsub.f32 1.0, %v129
    %v131 = vmul.f32 %v128, %v130
    %v132 = vadd.f32 %v128, %v131
    %vm133 = vweird.f32 %v127
    %vm134 = vweird.f32 %v128
    %vm135 = vmor %vm133, %vm134
    %v136 = vsel %vm135, %v128, %v132
    %v137 = vand.u32 2147483647, %v127
    %vm138 = vcmp.eq.f32.partialorder %v137, 8.507059e+37
    %v139 = vand.u32 %v127, 2147483648
    %v140 = vor.u32 1.1754944e-38, %v139
    %v141 = vsel %vm138, %v140, %v136
    %v142 = vmul.f32 %v117, %v141
    %v143 = vmin.f32 %v142, 1.0
    %v144 = vmax.f32 %v143, -1.0
    %v145 = vadd.f32 %v104, 1.0
    %v146 = vadd.f32 %v144, 1.0
    %v147 = vmul.f32 %v61, %v145
    %v148 = vmul.f32 %v62, %v146
    %v149 = vld [vmem:[%s3] sm:$0xff]
    %v150 = vld [vmem:[%s3 + $0x8] sm:$0xff]
    %v151 = vld [vmem:[%s3 + $0x10] sm:$0xff]
    %v152 = vld [vmem:[%s3 + $0x18] sm:$0xff]
    %v153 = vld [vmem:[%s3 + $0x20] sm:$0xff]
    %v154 = vld [vmem:[%s3 + $0x28] sm:$0xff]
    %v155 = vld [vmem:[%s3 + $0x30] sm:$0xff]
    %v156 = vld [vmem:[%s3 + $0x38] sm:$0xff]
    %v157 = vld [vmem:[%s4] sm:$0x1]
    %v159 = vperm.slane %v157, 0
    %vm161 = vcmask 523264
    %v163 = vsel %vm161, %v147, 0
    %v166 = vsel %vm161, %v148, 0
    %168 = vmatpush.msra.mxu0 0.0
    %169 = vmatpush.msra.mxu0 0.0
    %170 = vmatpush.msra.mxu0 0.0
    %171 = vmatpush.msra.mxu0 0.0
    %172 = vmatpush.msra.mxu0 0.0
    %173 = vmatpush.msra.mxu0 0.0
    %174 = vmatpush.msra.mxu0 0.0
    %175 = vmatpush.msra.mxu0 0.0
    %176 = vmatpush.msra.mxu0 %v156
    %177 = vmatpush.msra.mxu0 %v155
    %178 = vmatpush.msra.mxu0 %v154
    %179 = vmatpush.msra.mxu0 %v153
    %180 = vmatpush.msra.mxu0 %v152
    %181 = vmatpush.msra.mxu0 %v151
    %182 = vmatpush.msra.mxu0 %v150
    %183 = vmatpush.msra.mxu0 %v149
    %184 = vmatmul.f32.gmra.mxu0 %v163
    %v185 = vpop.f32.mrf.mxu0
    %v186 = vadd.f32 %v159, %v185
    %187 = vmatmul.f32.gmra.mxu0 %v166
    %v188 = vpop.f32.mrf.mxu0
    %v189 = vadd.f32 %v159, %v188
    %190 = vdwg.mxu0
    %v191 = vmul.f32 %v186, 0.5
    %v192 = vmul.f32 %v189, 0.5
    %v193 = vmul.f32 %v186, 0.70710677
    %v194 = vmul.f32 %v189, 0.70710677
    %v195 = vmul.f32 %v193, %v193
    %v196 = vmin.f32 16.0, %v195
    %v197 = vmul.f32 %v196, 2.1237322e-06
    %v198 = vadd.f32 %v197, 0.00028619796
    %v199 = vmul.f32 %v196, %v198
    %v200 = vadd.f32 %v199, 0.0036580483
    %v201 = vmul.f32 %v196, %v200
    %v202 = vadd.f32 %v201, 0.05243302
    %v203 = vmul.f32 %v196, %v202
    %v204 = vadd.f32 %v203, 0.18741608
    %v205 = vmul.f32 %v196, %v204
    %v206 = vadd.f32 %v205, 1.1283791
    %v207 = vmul.f32 %v193, %v206
    %v208 = vmul.f32 %v196, 3.8918573e-05
    %v209 = vadd.f32 %v208, 0.001143296
    %v210 = vmul.f32 %v196, %v209
    %v211 = vadd.f32 %v210, 0.014752088
    %v212 = vmul.f32 %v196, %v211
    %v213 = vadd.f32 %v212, 0.112945676
    %v214 = vmul.f32 %v196, %v213
    %v215 = vadd.f32 %v214, 0.4994258
    %v216 = vmul.f32 %v196, %v215
    %v217 = vadd.f32 %v216, 1.0
    %v218 = vrcp.pop %v217
    %v219 = vmul.f32 %v217, %v218
    %v220 = vsub.f32 1.0, %v219
    %v221 = vmul.f32 %v218, %v220
    %v222 = vadd.f32 %v218, %v221
    %vm223 = vweird.f32 %v217
    %vm224 = vweird.f32 %v218
    %vm225 = vmor %vm223, %vm224
    %v226 = vsel %vm225, %v218, %v222
    %v227 = vand.u32 2147483647, %v217
    %vm228 = vcmp.eq.f32.partialorder %v227, 8.507059e+37
    %v229 = vand.u32 %v217, 2147483648
    %v230 = vor.u32 1.1754944e-38, %v229
    %v231 = vsel %vm228, %v230, %v226
    %v232 = vmul.f32 %v207, %v231
    %v233 = vmin.f32 %v232, 1.0
    %v234 = vmax.f32 %v233, -1.0
    %v235 = vmul.f32 %v194, %v194
    %v236 = vmin.f32 16.0, %v235
    %v237 = vmul.f32 %v236, 2.1237322e-06
    %v238 = vadd.f32 %v237, 0.00028619796
    %v239 = vmul.f32 %v236, %v238
    %v240 = vadd.f32 %v239, 0.0036580483
    %v241 = vmul.f32 %v236, %v240
    %v242 = vadd.f32 %v241, 0.05243302
    %v243 = vmul.f32 %v236, %v242
    %v244 = vadd.f32 %v243, 0.18741608
    %v245 = vmul.f32 %v236, %v244
    %v246 = vadd.f32 %v245, 1.1283791
    %v247 = vmul.f32 %v194, %v246
    %v248 = vmul.f32 %v236, 3.8918573e-05
    %v249 = vadd.f32 %v248, 0.001143296
    %v250 = vmul.f32 %v236, %v249
    %v251 = vadd.f32 %v250, 0.014752088
    %v252 = vmul.f32 %v236, %v251
    %v253 = vadd.f32 %v252, 0.112945676
    %v254 = vmul.f32 %v236, %v253
    %v255 = vadd.f32 %v254, 0.4994258
    %v256 = vmul.f32 %v236, %v255
    %v257 = vadd.f32 %v256, 1.0
    %v258 = vrcp.pop %v257
    %v259 = vmul.f32 %v257, %v258
    %v260 = vsub.f32 1.0, %v259
    %v261 = vmul.f32 %v258, %v260
    %v262 = vadd.f32 %v258, %v261
    %vm263 = vweird.f32 %v257
    %vm264 = vweird.f32 %v258
    %vm265 = vmor %vm263, %vm264
    %v266 = vsel %vm265, %v258, %v262
    %v267 = vand.u32 2147483647, %v257
    %vm268 = vcmp.eq.f32.partialorder %v267, 8.507059e+37
    %v269 = vand.u32 %v257, 2147483648
    %v270 = vor.u32 1.1754944e-38, %v269
    %v271 = vsel %vm268, %v270, %v266
    %v272 = vmul.f32 %v247, %v271
    %v273 = vmin.f32 %v272, 1.0
    %v274 = vmax.f32 %v273, -1.0
    %v275 = vadd.f32 %v234, 1.0
    %v276 = vadd.f32 %v274, 1.0
    %v277 = vmul.f32 %v191, %v275
    %v278 = vmul.f32 %v192, %v276
    %279 = vst.msk [vmem:[#allocation2] sm:$0xff] %vm31, %v277
    %280 = vst.msk [vmem:[#allocation2 + $0x8] sm:$0xff] %vm31, %v278
    // Predicated region
    $region22: #{tpu_custom_call.1} parent=1 // pred_check
      _
    $region23: #{tpu_custom_call.1} parent=1 // pred_check_branch
      %282 = sbr.rel (0) target = $region25
    $region24: #{tpu_custom_call.1} parent=1 // pred_region
      %284 = vsyncadd [#allocation3], 0
      %s285 = sshll.u32 [#allocation2], 4
      %s286 = int_to_ptr.vmem [resolvable:$true] %s285
      %s287 = sshll.u32 %s5, 4
      %s288 = int_to_ptr.hbm [resolvable:$true] %s287
      %293 = dma.vmem_to_hbm [thread:$0]  %s286, 256, %s288, [#allocation3], 128, 128, 8
    $region25: #{tpu_custom_call.1} parent=1 // pred_fallthru
      _
    // Predicated region
    $region26: #{tpu_custom_call.1} parent=1 // pred_check
      _
    $region27: #{tpu_custom_call.1} parent=1 // pred_check_branch
      %295 = sbr.rel (0) target = $region29
    $region28: #{tpu_custom_call.1} parent=1 // pred_region
      %297 = dma.done [#allocation3], 256
    $region29: #{tpu_custom_call.1} parent=1 // pred_fallthru
      _
    %298 = vsyncpa [#allocation3], 1

</llo_original>
